<compile_context>
chip_gen: v6e
topology: v6e:2x2x1
jax: 0.10.0
libtpu: 0.0.40
codegen_flags: <defaults>
</compile_context>

<pallas_src>
import jax
import jax.numpy as jnp
from jax.experimental import pallas as pl
from jax.experimental.pallas import tpu as pltpu


def _gate_kernel(inst_ref, glob_ref, w1i_ref, w1g_ref, b1_ref, w2_ref, b2_ref,
                 out_ref):
    # First Linear (2F -> F): the concat is fused as the sum of two matmuls.
    # Activations arrive as f32 (no extra HBM round trip) and are cast to
    # bf16 here; weights are already bf16; accumulation is f32 on the MXU.
    inst = inst_ref[...].astype(jnp.bfloat16)
    glob = glob_ref[...].astype(jnp.bfloat16)
    h = (jnp.dot(inst, w1i_ref[...], preferred_element_type=jnp.float32)
         + jnp.dot(glob, w1g_ref[...], preferred_element_type=jnp.float32)
         + b1_ref[...])
    # LeakyReLU (PyTorch default negative_slope = 0.01), f32 on the VPU.
    h = jnp.where(h > 0, h, 0.01 * h)
    # Second Linear (F -> 1): VPU multiply + lane reduction instead of a
    # 1-column MXU matmul.  w2_ref is the (1, F) weight row, b2 an SMEM scalar.
    attn = jnp.sum(h * w2_ref[...], axis=-1) + b2_ref[0]          # (tm,)
    # Lane-dense store: write the tile's result as a (1, tm) row.
    out_ref[...] = attn[None, :].astype(out_ref.dtype)


def _round_up(x, m):
    return ((x + m - 1) // m) * m


def _pick_row_tile(n, block_rows):
    """Row tile: multiple of 8 sublanes; multiple of 128 whenever the grid has
    more than one block so the lane-dense (1, tm) output block stays legal.
    Big tiles amortize per-grid-step overhead; for large N aim for >=4 blocks
    so the single 'parallel' axis can shard across both v7x TensorCores."""
    n_r8 = _round_up(max(n, 1), 8)
    if n_r8 <= 512:
        return n_r8                                   # single block
    cap = max(128, _round_up(block_rows, 128))
    return min(cap, max(128, _round_up(pl.cdiv(n, 4), 128)))


def instance_attention_gate(instance_feature, global_feature, params, *,
                            block_rows=4096):
    """instance_feature, global_feature: (N, F) float32.  Returns (N, 1) f32."""
    w1i, w1g, b1, w2_row, b2 = params
    N, F = instance_feature.shape

    # Weights are tiny (2*F*F elems): cast once at trace time to bf16 so the
    # MXU runs a native bf16 pass.  Activations stay f32 in HBM.
    w1i_bf = w1i.astype(jnp.bfloat16)
    w1g_bf = w1g.astype(jnp.bfloat16)

    tm = _pick_row_tile(N, block_rows)
    num_blocks = pl.cdiv(N, tm)
    n_pad = num_blocks * tm        # lane-dense output row padded to whole blocks

    flops = 2 * N * F * (2 * F + 1)
    bytes_accessed = 4 * 2 * N * F + 2 * 2 * F * F + 4 * (2 * F + 1) + 4 * N

    out = pl.pallas_call(
        _gate_kernel,
        out_shape=jax.ShapeDtypeStruct((1, n_pad), jnp.float32),
        grid=(num_blocks,),
        in_specs=[
            # Streamed row tiles (f32, partial edge block handled by Pallas).
            pl.BlockSpec((tm, F), lambda i: (i, 0)),   # instance rows
            pl.BlockSpec((tm, F), lambda i: (i, 0)),   # global rows
            # Weights / biases: constant block index -> resident in VMEM.
            pl.BlockSpec((F, F), lambda i: (0, 0)),    # W1 instance half (in,out)
            pl.BlockSpec((F, F), lambda i: (0, 0)),    # W1 global half   (in,out)
            pl.BlockSpec((1, F), lambda i: (0, 0)),    # b1
            pl.BlockSpec((1, F), lambda i: (0, 0)),    # W2 as a (1, F) row
            # b2 scalar lives in SMEM as a 1-D (1,) array.
            pl.BlockSpec(memory_space=pltpu.MemorySpace.SMEM),
        ],
        out_specs=pl.BlockSpec((1, tm), lambda i: (0, i)),
        compiler_params=pltpu.CompilerParams(
            dimension_semantics=("parallel",)),
        cost_estimate=pl.CostEstimate(flops=flops, transcendentals=0,
                                      bytes_accessed=int(bytes_accessed)),
    )(instance_feature, global_feature, w1i_bf, w1g_bf, b1, w2_row, b2)

    return out[0, :N].reshape(N, 1)


def init_params(key, feat_dim):
    """Deterministic synthetic parameters matching nn.Linear shapes."""
    k1, k2, k3, k4 = jax.random.split(key, 4)
    # Linear(2F, F): weight (F, 2F) -> stored transposed (2F, F), split halves.
    bound1 = 1.0 / jnp.sqrt(2.0 * feat_dim)
    w1 = jax.random.uniform(k1, (2 * feat_dim, feat_dim), jnp.float32,
                            -bound1, bound1)
    b1 = jax.random.uniform(k2, (1, feat_dim), jnp.float32, -bound1, bound1)
    w1i, w1g = w1[:feat_dim], w1[feat_dim:]
    # Linear(F, 1): weight (1, F) kept as a row for the VPU reduction.
    bound2 = 1.0 / jnp.sqrt(float(feat_dim))
    w2_row = jax.random.uniform(k3, (1, feat_dim), jnp.float32, -bound2, bound2)
    b2 = jax.random.uniform(k4, (1,), jnp.float32, -bound2, bound2)
    return (w1i, w1g, b1, w2_row, b2)


def _reference(instance_feature, global_feature, params):
    """Pure-JAX reference replicating the kernel's bf16 operand rounding."""
    w1i, w1g, b1, w2_row, b2 = params
    inst = instance_feature.astype(jnp.bfloat16).astype(jnp.float32)
    glob = global_feature.astype(jnp.bfloat16).astype(jnp.float32)
    w1i_r = w1i.astype(jnp.bfloat16).astype(jnp.float32)
    w1g_r = w1g.astype(jnp.bfloat16).astype(jnp.float32)
    h = inst @ w1i_r + glob @ w1g_r + b1
    h = jnp.where(h > 0, h, 0.01 * h)
    return jnp.sum(h * w2_row, axis=-1, keepdims=True) + b2


if __name__ == "__main__":
    key = jax.random.PRNGKey(0)
    k_inst, k_glob, k_param, k_rest = jax.random.split(key, 4)

    # --- primary test: tiny batch, F=32 (lane-padded small-F case) ---
    feat_dim = 32
    params = init_params(k_param, feat_dim)
    N = 8
    instance_feature = jax.random.normal(k_inst, (N, feat_dim), jnp.float32)
    global_feature = jax.random.normal(k_glob, (N, feat_dim), jnp.float32)

    attn = instance_attention_gate(instance_feature, global_feature, params)
    attn = jax.block_until_ready(attn)
    ref = _reference(instance_feature, global_feature, params)
    assert attn.shape == (N, 1)
    assert jnp.allclose(attn, ref, atol=2e-3, rtol=2e-3)

    # --- secondary test: multi-block grid + partial edge block, lane-dense F ---
    feat_dim2 = 128
    ka, kb, kc = jax.random.split(k_rest, 3)
    params2 = init_params(kc, feat_dim2)
    N2 = 600
    inst2 = jax.random.normal(ka, (N2, feat_dim2), jnp.float32)
    glob2 = jax.random.normal(kb, (N2, feat_dim2), jnp.float32)
    attn2 = instance_attention_gate(inst2, glob2, params2)
    attn2 = jax.block_until_ready(attn2)
    ref2 = _reference(inst2, glob2, params2)
    assert attn2.shape == (N2, 1)
    assert jnp.allclose(attn2, ref2, atol=2e-3, rtol=2e-3)

    print("KERNEL_OK")
</pallas_src>

<mosaic_0001>
module attributes {stable_mosaic.version = 11 : i64} {
  func.func @_gate_kernel(%arg0: i32, %arg1: memref<8x32xf32, #tpu.memory_space<vmem>>, %arg2: memref<8x32xf32, #tpu.memory_space<vmem>>, %arg3: memref<32x32xbf16, #tpu.memory_space<vmem>>, %arg4: memref<32x32xbf16, #tpu.memory_space<vmem>>, %arg5: memref<1x32xf32, #tpu.memory_space<vmem>>, %arg6: memref<1x32xf32, #tpu.memory_space<vmem>>, %arg7: memref<1xf32, #tpu.memory_space<smem>>, %arg8: memref<1x8xf32, #tpu.memory_space<vmem>>) attributes {dimension_semantics = [#tpu.dimension_semantics<parallel>], iteration_bounds = array<i64: 1>, scalar_prefetch = 0 : i64, scratch_operands = 0 : i64, tpu.core_type = #tpu.core_type<tc>, window_params = [{transform_indices = @transform_0, window_bounds = array<i64: 8, 32>}, {transform_indices = @transform_1, window_bounds = array<i64: 8, 32>}, {pipeline_mode = #tpu.pipeline_mode<synchronous>, transform_indices = @transform_2, window_bounds = array<i64: 32, 32>}, {pipeline_mode = #tpu.pipeline_mode<synchronous>, transform_indices = @transform_3, window_bounds = array<i64: 32, 32>}, {pipeline_mode = #tpu.pipeline_mode<synchronous>, transform_indices = @transform_4, window_bounds = array<i64: 1, 32>}, {pipeline_mode = #tpu.pipeline_mode<synchronous>, transform_indices = @transform_5, window_bounds = array<i64: 1, 32>}, {transform_indices = @transform_6, window_bounds = array<i64: 1>}, {transform_indices = @transform_7, window_bounds = array<i64: 1, 8>}]} {
    %c0 = arith.constant 0 : index
    %c0_0 = arith.constant 0 : index
    %0 = vector.load %arg1[%c0, %c0_0] : memref<8x32xf32, #tpu.memory_space<vmem>>, vector<8x32xf32>
    %1 = arith.truncf %0 : vector<8x32xf32> to vector<8x32xbf16>
    %c0_1 = arith.constant 0 : index
    %c0_2 = arith.constant 0 : index
    %2 = vector.load %arg2[%c0_1, %c0_2] : memref<8x32xf32, #tpu.memory_space<vmem>>, vector<8x32xf32>
    %3 = arith.truncf %2 : vector<8x32xf32> to vector<8x32xbf16>
    %c0_3 = arith.constant 0 : index
    %c0_4 = arith.constant 0 : index
    %4 = vector.load %arg3[%c0_3, %c0_4] : memref<32x32xbf16, #tpu.memory_space<vmem>>, vector<32x32xbf16>
    %cst = arith.constant dense<0.000000e+00> : vector<8x32xf32>
    %5 = tpu.matmul %1, %4, %cst {dimension_numbers = #tpu.dot_dimension_numbers<[1], [0], [0], [1], [0, 0, 1, 1], [], []>} : vector<8x32xbf16>, vector<32x32xbf16>, vector<8x32xf32> -> vector<8x32xf32>
    %c0_5 = arith.constant 0 : index
    %c0_6 = arith.constant 0 : index
    %6 = vector.load %arg4[%c0_5, %c0_6] : memref<32x32xbf16, #tpu.memory_space<vmem>>, vector<32x32xbf16>
    %cst_7 = arith.constant dense<0.000000e+00> : vector<8x32xf32>
    %7 = tpu.matmul %3, %6, %cst_7 {dimension_numbers = #tpu.dot_dimension_numbers<[1], [0], [0], [1], [0, 0, 1, 1], [], []>} : vector<8x32xbf16>, vector<32x32xbf16>, vector<8x32xf32> -> vector<8x32xf32>
    %8 = arith.addf %5, %7 : vector<8x32xf32>
    %c0_8 = arith.constant 0 : index
    %c0_9 = arith.constant 0 : index
    %9 = vector.load %arg5[%c0_8, %c0_9] : memref<1x32xf32, #tpu.memory_space<vmem>>, vector<1x32xf32>
    %10 = vector.broadcast %9 : vector<1x32xf32> to vector<8x32xf32>
    %11 = arith.addf %8, %10 : vector<8x32xf32>
    %cst_10 = arith.constant 0.000000e+00 : f32
    %12 = vector.broadcast %cst_10 : f32 to vector<8x32xf32>
    %13 = arith.cmpf ogt, %11, %12 : vector<8x32xf32>
    %cst_11 = arith.constant 0.00999999977 : f32
    %14 = vector.broadcast %cst_11 : f32 to vector<8x32xf32>
    %15 = arith.mulf %14, %11 : vector<8x32xf32>
    %16 = arith.select %13, %11, %15 : vector<8x32xi1>, vector<8x32xf32>
    %c0_12 = arith.constant 0 : index
    %c0_13 = arith.constant 0 : index
    %17 = vector.load %arg6[%c0_12, %c0_13] : memref<1x32xf32, #tpu.memory_space<vmem>>, vector<1x32xf32>
    %18 = vector.broadcast %17 : vector<1x32xf32> to vector<8x32xf32>
    %19 = arith.mulf %16, %18 : vector<8x32xf32>
    %cst_14 = arith.constant dense<0.000000e+00> : vector<8xf32>
    %20 = vector.multi_reduction <add>, %19, %cst_14 [1] : vector<8x32xf32> to vector<8xf32>
    %c0_15 = arith.constant 0 : index
    %21 = memref.load %arg7[%c0_15] : memref<1xf32, #tpu.memory_space<smem>>
    %22 = vector.broadcast %21 : f32 to vector<8xf32>
    %23 = arith.addf %20, %22 : vector<8xf32>
    %24 = vector.shape_cast %23 : vector<8xf32> to vector<1x8xf32>
    %c0_16 = arith.constant 0 : index
    %c0_17 = arith.constant 0 : index
    %25 = vector.load %arg8[%c0_16, %c0_17] : memref<1x8xf32, #tpu.memory_space<vmem>>, vector<1x8xf32>
    tpu.vector_store %arg8[%c0_16, %c0_17], %24 {strides = array<i32>} : memref<1x8xf32, #tpu.memory_space<vmem>>, vector<1x8xf32>,
    return
  }
  func.func @transform_0(%arg0: i32) -> (i32, i32) {
    %c0_i32 = arith.constant 0 : i32
    %c0_i32_0 = arith.constant 0 : i32
    return %arg0, %c0_i32 : i32, i32
  }
  func.func @transform_1(%arg0: i32) -> (i32, i32) {
    %c0_i32 = arith.constant 0 : i32
    %c0_i32_0 = arith.constant 0 : i32
    return %arg0, %c0_i32 : i32, i32
  }
  func.func @transform_2(%arg0: i32) -> (i32, i32) {
    %c0_i32 = arith.constant 0 : i32
    %c0_i32_0 = arith.constant 0 : i32
    %c0_i32_1 = arith.constant 0 : i32
    return %c0_i32, %c0_i32_0 : i32, i32
  }
  func.func @transform_3(%arg0: i32) -> (i32, i32) {
    %c0_i32 = arith.constant 0 : i32
    %c0_i32_0 = arith.constant 0 : i32
    %c0_i32_1 = arith.constant 0 : i32
    return %c0_i32, %c0_i32_0 : i32, i32
  }
  func.func @transform_4(%arg0: i32) -> (i32, i32) {
    %c0_i32 = arith.constant 0 : i32
    %c0_i32_0 = arith.constant 0 : i32
    %c0_i32_1 = arith.constant 0 : i32
    return %c0_i32, %c0_i32_0 : i32, i32
  }
  func.func @transform_5(%arg0: i32) -> (i32, i32) {
    %c0_i32 = arith.constant 0 : i32
    %c0_i32_0 = arith.constant 0 : i32
    %c0_i32_1 = arith.constant 0 : i32
    return %c0_i32, %c0_i32_0 : i32, i32
  }
  func.func @transform_6(%arg0: i32) -> i32 {
    %c0_i32 = arith.constant 0 : i32
    %c0_i32_0 = arith.constant 0 : i32
    return %c0_i32 : i32
  }
  func.func @transform_7(%arg0: i32) -> (i32, i32) {
    %c0_i32 = arith.constant 0 : i32
    %c0_i32_0 = arith.constant 0 : i32
    return %c0_i32, %arg0 : i32, i32
  }
}

</mosaic_0001>

<llo_original>
// kernel: tpu_custom_call.1
$region0: #{tpu_custom_call.1}
  #allocation0 [shape = 'u32[]', space=smem, size = 0x4, offset = 0x4, fixed_abs, tag = 'smem constant byte address 0x4 - core index']
  #allocation1 [shape = 'u32[144,128]{1,0:T(1,128)}', space=vmem, size = 0x12000, scoped, tag = 'internal scratch']
  #allocation2 [shape = 'f32[1]{0:T(128)S(6)}', space=smem, size = 0x200, scoped, tag = 'scoped memory for tpu_custom_call.1']
  %s0 = inlined_call_operand.hbm [shape: f32[8,32], index: 0, kind: input, shape index: {}]
  %s1 = inlined_call_operand.hbm [shape: f32[8,32], index: 1, kind: input, shape index: {}]
  %s2 = inlined_call_operand.hbm [shape: bf16[32,32], index: 2, kind: input, shape index: {}]
  %s3 = inlined_call_operand.hbm [shape: bf16[32,32], index: 3, kind: input, shape index: {}]
  %s4 = inlined_call_operand.vmem [shape: f32[1,32], index: 4, kind: input, shape index: {}]
  %s5 = inlined_call_operand.vmem [shape: f32[1,32], index: 5, kind: input, shape index: {}]
  %s6 = inlined_call_operand.<no memory space> [shape: f32[1], index: 6, kind: input, shape index: {}]
  %s7 = inlined_call_operand.hbm [shape: f32[1,8], index: 7, kind: output, shape index: {}]
  %s8 = sld [smem:[#allocation0]]
  $region54: #{tpu_custom_call.1} parent=0
    _
  %s10 = ssub.s32 1, %s8
  %s11 = scalar_select 0, %s10, %s8
  %12 = sst [smem:[#allocation2]] %s6
  $region1: #{tpu_custom_call.1} parent=0
    #allocation3 [shape = 'u8[4096]{0}', space=vmem, size = 0x1000, scoped, tag = 'input window, operand 0, single buffered']
    #allocation4 [shape = 's32[1]{0}', space=sflag, size = 0x4, scoped, tag = 'scoped memory for tpu_custom_call.1']
    #allocation5 [shape = 's32[1]{0}', space=sflag, size = 0x4, scoped, tag = 'scoped memory for tpu_custom_call.1']
    #allocation6 [shape = 'u8[4096]{0}', space=vmem, size = 0x1000, scoped, tag = 'input window, operand 1, single buffered']
    #allocation7 [shape = 's32[1]{0}', space=sflag, size = 0x4, scoped, tag = 'scoped memory for tpu_custom_call.1']
    #allocation8 [shape = 'u8[8192]{0}', space=vmem, size = 0x2000, scoped, tag = 'input window, operand 2, single buffered']
    #allocation9 [shape = 'u8[8192]{0}', space=vmem, size = 0x2000, scoped, tag = 'input window, operand 3, single buffered']
    #allocation10 [shape = 's32[1]{0}', space=sflag, size = 0x4, scoped, tag = 'scoped memory for tpu_custom_call.1']
    #allocation11 [shape = 'u8[512]{0}', space=vmem, size = 0x400, scoped, tag = 'output window, operand 0, single buffered']
    %13 = vsyncpa [#allocation4], 0
    %14 = vsyncpa [#allocation7], 0
    %15 = vsyncpa [#allocation10], 0
    %16 = vsyncpa [#allocation5], 0
    // Predicated region
    $region2: #{tpu_custom_call.1} parent=1 // pred_check
      _
    $region3: #{tpu_custom_call.1} parent=1 // pred_check_branch
      %18 = sbr.rel (0) target = $region5
    $region4: #{tpu_custom_call.1} parent=1 // pred_region
      %s20 = ssub.s32 128, 128
      %21 = vsyncadd [#allocation4], %s20
      %s23 = sshll.u32 [#allocation3], 4
      %s24 = int_to_ptr.vmem [resolvable:$true] %s23
      %26 = dma.hbm_to_vmem [thread:$0]  %s0, 128, %s24, [#allocation4]
    $region5: #{tpu_custom_call.1} parent=1 // pred_fallthru
      _
    // Predicated region
    $region6: #{tpu_custom_call.1} parent=1 // pred_check
      _
    $region7: #{tpu_custom_call.1} parent=1 // pred_check_branch
      %28 = sbr.rel (0) target = $region9
    $region8: #{tpu_custom_call.1} parent=1 // pred_region
      %s30 = ssub.s32 128, 128
      %31 = vsyncadd [#allocation7], %s30
      %s33 = sshll.u32 [#allocation6], 4
      %s34 = int_to_ptr.vmem [resolvable:$true] %s33
      %36 = dma.hbm_to_vmem [thread:$0]  %s1, 128, %s34, [#allocation7]
    $region9: #{tpu_custom_call.1} parent=1 // pred_fallthru
      _
    // Predicated region
    $region10: #{tpu_custom_call.1} parent=1 // pred_check
      _
    $region11: #{tpu_custom_call.1} parent=1 // pred_check_branch
      %38 = sbr.rel (0) target = $region13
    $region12: #{tpu_custom_call.1} parent=1 // pred_region
      %s40 = ssub.s32 256, 256
      %41 = vsyncadd [#allocation7], %s40
      %s42 = sshll.u32 [#allocation8], 4
      %s43 = int_to_ptr.vmem [resolvable:$true] %s42
      %48 = dma.hbm_to_vmem [thread:$0]  %s2, 256, %s43, [#allocation7], 64, 64, 4
    $region13: #{tpu_custom_call.1} parent=1 // pred_fallthru
      _
    // Predicated region
    $region14: #{tpu_custom_call.1} parent=1 // pred_check
      _
    $region15: #{tpu_custom_call.1} parent=1 // pred_check_branch
      %50 = sbr.rel (0) target = $region17
    $region16: #{tpu_custom_call.1} parent=1 // pred_region
      %s52 = ssub.s32 256, 256
      %53 = vsyncadd [#allocation10], %s52
      %s54 = sshll.u32 [#allocation9], 4
      %s55 = int_to_ptr.vmem [resolvable:$true] %s54
      %60 = dma.hbm_to_vmem [thread:$0]  %s3, 256, %s55, [#allocation10], 64, 64, 4
    $region17: #{tpu_custom_call.1} parent=1 // pred_fallthru
      _
    // Predicated region
    $region18: #{tpu_custom_call.1} parent=1 // pred_check
      _
    $region19: #{tpu_custom_call.1} parent=1 // pred_check_branch
      %62 = sbr.rel (0) target = $region21
    $region20: #{tpu_custom_call.1} parent=1 // pred_region
      _
    $region21: #{tpu_custom_call.1} parent=1 // pred_fallthru
      _
    // Predicated region
    $region22: #{tpu_custom_call.1} parent=1 // pred_check
      _
    $region23: #{tpu_custom_call.1} parent=1 // pred_check_branch
      %64 = sbr.rel (0) target = $region25
    $region24: #{tpu_custom_call.1} parent=1 // pred_region
      _
    $region25: #{tpu_custom_call.1} parent=1 // pred_fallthru
      _
    // Predicated region
    $region26: #{tpu_custom_call.1} parent=1 // pred_check
      _
    $region27: #{tpu_custom_call.1} parent=1 // pred_check_branch
      %66 = sbr.rel (0) target = $region29
    $region28: #{tpu_custom_call.1} parent=1 // pred_region
      _
    $region29: #{tpu_custom_call.1} parent=1 // pred_fallthru
      _
    // Predicated region
    $region30: #{tpu_custom_call.1} parent=1 // pred_check
      _
    $region31: #{tpu_custom_call.1} parent=1 // pred_check_branch
      %68 = sbr.rel (0) target = $region33
    $region32: #{tpu_custom_call.1} parent=1 // pred_region
      %69 = dma.done [#allocation4], 128
    $region33: #{tpu_custom_call.1} parent=1 // pred_fallthru
      _
    // Predicated region
    $region34: #{tpu_custom_call.1} parent=1 // pred_check
      _
    $region35: #{tpu_custom_call.1} parent=1 // pred_check_branch
      %71 = sbr.rel (0) target = $region37
    $region36: #{tpu_custom_call.1} parent=1 // pred_region
      %72 = dma.done [#allocation7], 128
    $region37: #{tpu_custom_call.1} parent=1 // pred_fallthru
      _
    // Predicated region
    $region38: #{tpu_custom_call.1} parent=1 // pred_check
      _
    $region39: #{tpu_custom_call.1} parent=1 // pred_check_branch
      %74 = sbr.rel (0) target = $region41
    $region40: #{tpu_custom_call.1} parent=1 // pred_region
      %75 = dma.done [#allocation7], 256
    $region41: #{tpu_custom_call.1} parent=1 // pred_fallthru
      _
    // Predicated region
    $region42: #{tpu_custom_call.1} parent=1 // pred_check
      _
    $region43: #{tpu_custom_call.1} parent=1 // pred_check_branch
      %77 = sbr.rel (0) target = $region45
    $region44: #{tpu_custom_call.1} parent=1 // pred_region
      %78 = dma.done [#allocation10], 256
    $region45: #{tpu_custom_call.1} parent=1 // pred_fallthru
      _
    %v80 = vld [vmem:[#allocation3] sm:$0xff]
    %v81 = vpack.c.bf16 %v80, %v80
    %v82 = vld [vmem:[#allocation6] sm:$0xff]
    %v83 = vpack.c.bf16 %v82, %v82
    %v84 = vld [vmem:[#allocation8] sm:$0xf]
    %v85 = vld [vmem:[#allocation8 + $0x4] sm:$0xf]
    %v86 = vld [vmem:[#allocation8 + $0x8] sm:$0xf]
    %v87 = vld [vmem:[#allocation8 + $0xc] sm:$0xf]
    %v88 = vld [vmem:[#allocation9] sm:$0xf]
    %v89 = vld [vmem:[#allocation9 + $0x4] sm:$0xf]
    %v90 = vld [vmem:[#allocation9 + $0x8] sm:$0xf]
    %v91 = vld [vmem:[#allocation9 + $0xc] sm:$0xf]
    %v96 = vunpack.c.l.b16 %v88
    %v97 = vunpack.c.l.b16 %v89
    %v98 = vunpack.c.l.b16 %v90
    %v99 = vunpack.c.l.b16 %v91
    %v100 = vpack.c.b16 %v97, %v96
    %v101 = vpack.c.b16 %v99, %v98
    %vm104 = vcmask 261120
    %v106 = vsel %vm104, %v83, 0
    %108 = vmatprep.subr.bf16.mxu0 0
    %109 = vmatpush1.bf16.msra.mxu0 0
    %110 = vmatprep.subr.bf16.mxu0 0
    %111 = vmatpush1.bf16.msra.mxu0 0
    %112 = vmatprep.subr.bf16.mxu0 0
    %113 = vmatpush1.bf16.msra.mxu0 0
    %114 = vmatprep.subr.bf16.mxu0 0
    %115 = vmatpush1.bf16.msra.mxu0 0
    %116 = vmatprep.subr.bf16.mxu0 0
    %117 = vmatpush1.bf16.msra.mxu0 0
    %118 = vmatprep.subr.bf16.mxu0 0
    %119 = vmatpush1.bf16.msra.mxu0 0
    %120 = vmatprep.subr.bf16.mxu0 0
    %121 = vmatpush1.bf16.msra.mxu0 %v101
    %122 = vmatprep.subr.bf16.mxu0 0
    %123 = vmatpush1.bf16.msra.mxu0 %v100
    %124 = vmatprep.subr.bf16.mxu0 0
    %125 = vmatpush2.bf16.msra.mxu0 0
    %126 = vmatprep.subr.bf16.mxu0 0
    %127 = vmatpush2.bf16.msra.mxu0 0
    %128 = vmatprep.subr.bf16.mxu0 0
    %129 = vmatpush2.bf16.msra.mxu0 0
    %130 = vmatprep.subr.bf16.mxu0 0
    %131 = vmatpush2.bf16.msra.mxu0 0
    %132 = vmatprep.subr.bf16.mxu0 0
    %133 = vmatpush2.bf16.msra.mxu0 0
    %134 = vmatprep.subr.bf16.mxu0 0
    %135 = vmatpush2.bf16.msra.mxu0 0
    %136 = vmatprep.subr.bf16.mxu0 0
    %137 = vmatpush2.bf16.msra.mxu0 0
    %138 = vmatprep.subr.bf16.mxu0 0
    %139 = vmatpush2.bf16.msra.mxu0 0
    %140 = vmatprep.mubr.bf16.mxu0 0
    %141 = vmatmul.mubr.bf16.gmra.mxu0 %v106
    %v142 = vpop.f32.mrf.mxu0
    %v143 = vadd.f32 0.0, %v142
    %v144 = vpop.f32.mrf.mxu0
    %v145 = vpop.f32.mrf.mxu0
    %v146 = vpop.f32.mrf.mxu0
    %147 = vdwg.mxu0
    %v152 = vunpack.c.l.b16 %v84
    %v153 = vunpack.c.l.b16 %v85
    %v154 = vunpack.c.l.b16 %v86
    %v155 = vunpack.c.l.b16 %v87
    %v156 = vpack.c.b16 %v153, %v152
    %v157 = vpack.c.b16 %v155, %v154
    %v161 = vsel %vm104, %v81, 0
    %163 = vmatprep.subr.bf16.mxu0 0
    %164 = vmatpush1.bf16.msra.mxu0 0
    %165 = vmatprep.subr.bf16.mxu0 0
    %166 = vmatpush1.bf16.msra.mxu0 0
    %167 = vmatprep.subr.bf16.mxu0 0
    %168 = vmatpush1.bf16.msra.mxu0 0
    %169 = vmatprep.subr.bf16.mxu0 0
    %170 = vmatpush1.bf16.msra.mxu0 0
    %171 = vmatprep.subr.bf16.mxu0 0
    %172 = vmatpush1.bf16.msra.mxu0 0
    %173 = vmatprep.subr.bf16.mxu0 0
    %174 = vmatpush1.bf16.msra.mxu0 0
    %175 = vmatprep.subr.bf16.mxu0 0
    %176 = vmatpush1.bf16.msra.mxu0 %v157
    %177 = vmatprep.subr.bf16.mxu0 0
    %178 = vmatpush1.bf16.msra.mxu0 %v156
    %179 = vmatprep.subr.bf16.mxu0 0
    %180 = vmatpush2.bf16.msra.mxu0 0
    %181 = vmatprep.subr.bf16.mxu0 0
    %182 = vmatpush2.bf16.msra.mxu0 0
    %183 = vmatprep.subr.bf16.mxu0 0
    %184 = vmatpush2.bf16.msra.mxu0 0
    %185 = vmatprep.subr.bf16.mxu0 0
    %186 = vmatpush2.bf16.msra.mxu0 0
    %187 = vmatprep.subr.bf16.mxu0 0
    %188 = vmatpush2.bf16.msra.mxu0 0
    %189 = vmatprep.subr.bf16.mxu0 0
    %190 = vmatpush2.bf16.msra.mxu0 0
    %191 = vmatprep.subr.bf16.mxu0 0
    %192 = vmatpush2.bf16.msra.mxu0 0
    %193 = vmatprep.subr.bf16.mxu0 0
    %194 = vmatpush2.bf16.msra.mxu0 0
    %195 = vmatprep.mubr.bf16.mxu0 0
    %196 = vmatmul.mubr.bf16.gmra.mxu0 %v161
    %v197 = vpop.f32.mrf.mxu0
    %v198 = vadd.f32 %v143, %v197
    %v199 = vpop.f32.mrf.mxu0
    %v200 = vpop.f32.mrf.mxu0
    %v201 = vpop.f32.mrf.mxu0
    %202 = vdwg.mxu0
    %v203 = vld [vmem:[%s4] sm:$0x1]
    %v205 = vlaneseq
    %v206 = vshrl.u32 %v205, 7
    %v207 = vsub.s32 0, %v206
    %v208 = vrot.slane %v203, %v207
    %v210 = vadd.f32 %v198, %v208
    %vm211 = vcmp.gt.f32.partialorder %v210, 0.0
    %v212 = vmul.f32 %v210, 0.01
    %v213 = vsel %vm211, %v210, %v212
    %v214 = vld [vmem:[%s5] sm:$0x1]
    %v216 = vlaneseq
    %v217 = vshrl.u32 %v216, 7
    %v218 = vsub.s32 0, %v217
    %v219 = vrot.slane %v214, %v218
    %v221 = vmul.f32 %v213, %v219
    %v222 = vsel %vm104, %v221, 0.0
    %223 = vadd.xlane.f32.xlu0 %v222
    %v224 = vpop.xlane.xlu0 %223
    %s225 = sld [smem:[#allocation2]]
    %v226 = vstv %s225
    %v227 = vadd.f32 %v224, %v226
    %v229 = vlaneseq
    %v230 = vand.u32 %v229, 127
    %v231 = vlaneseq
    %v232 = vshrl.u32 %v231, 7
    %v233 = vsub.s32 %v230, %v232
    %v234 = vrot.slane %v227, %v233
    %vm236 = vcmask 57344
    %237 = vst.msk [vmem:[#allocation11] sm:$0x1] %vm236, %v234
    // Predicated region
    $region46: #{tpu_custom_call.1} parent=1 // pred_check
      _
    $region47: #{tpu_custom_call.1} parent=1 // pred_check_branch
      %239 = sbr.rel (0) target = $region49
    $region48: #{tpu_custom_call.1} parent=1 // pred_region
      %s241 = ssub.s32 16, 16
      %242 = vsyncadd [#allocation5], %s241
      %s244 = sshll.u32 [#allocation11], 4
      %s245 = int_to_ptr.vmem [resolvable:$true] %s244
      %247 = dma.vmem_to_hbm [thread:$0]  %s245, 16, %s7, [#allocation5]
    $region49: #{tpu_custom_call.1} parent=1 // pred_fallthru
      _
    // Predicated region
    $region50: #{tpu_custom_call.1} parent=1 // pred_check
      _
    $region51: #{tpu_custom_call.1} parent=1 // pred_check_branch
      %249 = sbr.rel (0) target = $region53
    $region52: #{tpu_custom_call.1} parent=1 // pred_region
      %250 = dma.done [#allocation5], 16
    $region53: #{tpu_custom_call.1} parent=1 // pred_fallthru
      _
    %251 = vsyncpa [#allocation4], 1
    %252 = vsyncpa [#allocation7], 1
    %253 = vsyncpa [#allocation10], 1
    %254 = vsyncpa [#allocation5], 1

</llo_original>
